<compile_context>
chip_gen: v7x
topology: tpu7x:2x2x1
jax: 0.10.0
libtpu: 0.0.40
codegen_flags: <defaults>
</compile_context>

<pallas_src>
import functools

import jax
import jax.numpy as jnp
import numpy as np
from jax import lax
from jax.experimental import pallas as pl
from jax.experimental.pallas import tpu as pltpu


_DEFAULT_BLOCK_N = 8192  # (B, 8192) f32 double-buffered blocks stay far under VMEM on v5e/v6e/v7x


# ----------------------------------------------------------- small helpers --

def _abs_pow(x, p: int):
    """|x|**p for small static integer p via multiplies (no exp/log pow)."""
    if p == 1:
        return jnp.abs(x)
    if p == 2:
        return x * x                      # even power: abs not needed
    a = jnp.abs(x)
    r = a
    for _ in range(p - 1):
        r = r * a
    return r


def _root(x, p: int):
    """x**(1/p); only applied to tiny (B,1) arrays at finalize."""
    if p == 1:
        return x
    if p == 2:
        return jnp.sqrt(x)
    return x ** (1.0 / p)


# ------------------------------------------------------------------ kernels --

def _lp_kernel(x_ref, out_ref, acc_ref, *, p, n_true, n_rows, num_blocks):
    # loss = mean_b( (sum_n |x|^p)^(1/p) ) / N
    s = pl.program_id(0)

    @pl.when(s == 0)
    def _():
        acc_ref[...] = jnp.zeros_like(acc_ref)

    # Padded tail columns are zero, so they contribute nothing to sum(|x|^p).
    x = x_ref[...]
    acc_ref[...] += jnp.sum(_abs_pow(x, p), axis=1, keepdims=True)

    @pl.when(s == num_blocks - 1)
    def _():
        norms = _root(acc_ref[...], p)                                   # (B, 1)
        out_ref[...] = jnp.sum(norms, axis=0, keepdims=True) / (n_rows * n_true)


def _edge_kernel(x_ref, out_ref, acc_ref, prev_ref, first_ref, *,
                 pair_fn, finalize_fn, block_n, n_true, num_blocks):
    # Generic cyclic neighbor-pair reduction:
    #   per row, acc = sum_{i=0..N-1} pair_fn(x[(i-1) % N], x[i])
    # tiled over N with a carry of the previous tile's last column.
    s = pl.program_id(0)
    x = x_ref[...]

    @pl.when(s == 0)
    def _():
        acc_ref[...] = jnp.zeros_like(acc_ref)
        first_ref[...] = x[:, 0:1]        # x[:, 0] globally, needed for the wrap edge

    # Directed edges (prev = x[j-1], cur = x[j]) fully inside this tile (local j >= 1).
    xr = pltpu.roll(x, shift=1, axis=1)                      # column j <- column j-1 (tile wrap at j=0)
    lane = lax.broadcasted_iota(jnp.int32, x.shape, 1)
    gi = s * block_n + lane                                  # global column index
    valid = (lane >= 1) & (gi < n_true)                      # drop tile-wrap col 0 and padded tail
    acc_ref[...] += jnp.sum(jnp.where(valid, pair_fn(xr, x), 0.0),
                            axis=1, keepdims=True)

    # Edge crossing the tile boundary: (last col of previous tile, first col of this tile).
    @pl.when(s > 0)
    def _():
        acc_ref[...] += pair_fn(prev_ref[...], x[:, 0:1])

    # Carry this tile's last column for the next step.
    prev_ref[...] = x[:, block_n - 1:block_n]

    @pl.when(s == num_blocks - 1)
    def _():
        last_local = (n_true - 1) - (num_blocks - 1) * block_n   # static python int
        wrap_prev = x[:, last_local:last_local + 1]              # x[:, N-1] globally
        acc = acc_ref[...] + pair_fn(wrap_prev, first_ref[...])  # cyclic wrap edge (i = 0)
        out_ref[...] = finalize_fn(acc)


# --------------------------------------------------- per-mode pair/finalize --

def _variance_pair(p):
    def pair(prev, cur):
        return _abs_pow(cur - prev, p)
    return pair


def _variance_finalize(p, n_true, n_rows):
    # mean_n((|fwd diff|^p + |bwd diff|^p)/2) == (sum over cyclic edges)/N
    def fin(acc):
        per_row = _root(acc / n_true, p)                             # (B, 1)
        return jnp.sum(per_row, axis=0, keepdims=True) / n_rows      # (1, 1)
    return fin


def _boltzmann_pair(prev, cur):
    # Only two transcendentals per element: e1 = exp(|prev|), e2 = exp(-|cur|).
    #   mask1: |prev| > |cur|        -> exp(|prev|-|cur|) - 1 = e1*e2 - 1
    #   mask2: prev > 0 and cur < 0  -> exp(prev) - 1        = e1 - 1   (prev > 0)
    #   mask3: prev < 0 and cur > 0  -> exp(|prev|) - 1      = e1 - 1
    ap = jnp.abs(prev)
    ac = jnp.abs(cur)
    e1 = jnp.exp(ap)
    e2 = jnp.exp(-ac)
    opposite = ((prev > 0) & (cur < 0)) | ((prev < 0) & (cur > 0))
    val = jnp.where(ap > ac, e1 * e2 - 1.0, 0.0)
    val = val + jnp.where(opposite, e1 - 1.0, 0.0)
    return val


def _boltzmann_finalize(n_true, n_rows):
    def fin(acc):
        return jnp.sum(acc, axis=0, keepdims=True) / (n_rows * n_true)
    return fin


# ------------------------------------------------------------------ wrapper --

def _pad_and_tile(x, block_n):
    b, n = x.shape
    bn = min(int(block_n), pl.cdiv(n, 128) * 128)
    bn = max(128, (bn // 128) * 128)                 # lane-dense blocks (multiple of 128)
    n_pad = pl.cdiv(n, bn) * bn
    if n_pad != n:
        x = jnp.pad(x, ((0, 0), (0, n_pad - n)))     # zero pad; masked/neutral in-kernel
    return x, bn, n_pad // bn


def _scalar_call(kernel, x, b, bn, num_blocks, n_scratch):
    return pl.pallas_call(
        kernel,
        out_shape=jax.ShapeDtypeStruct((1, 1), jnp.float32),
        grid_spec=pltpu.PrefetchScalarGridSpec(
            num_scalar_prefetch=0,
            grid=(num_blocks,),
            in_specs=[pl.BlockSpec((b, bn), lambda s: (0, s))],
            out_specs=pl.BlockSpec((1, 1), lambda s: (0, 0)),
            scratch_shapes=[pltpu.VMEM((b, 1), jnp.float32)] * n_scratch),
        compiler_params=pltpu.CompilerParams(dimension_semantics=("arbitrary",)),
    )(x)[0, 0]


def _run_lp(x, p, block_n):
    b, n = x.shape
    xp, bn, num_blocks = _pad_and_tile(x, block_n)
    kernel = functools.partial(_lp_kernel, p=p, n_true=n, n_rows=b,
                               num_blocks=num_blocks)
    return _scalar_call(kernel, xp, b, bn, num_blocks, n_scratch=1)


def _run_edge(x, pair_fn, finalize_fn, block_n):
    b, n = x.shape
    xp, bn, num_blocks = _pad_and_tile(x, block_n)
    kernel = functools.partial(_edge_kernel, pair_fn=pair_fn, finalize_fn=finalize_fn,
                               block_n=bn, n_true=n, num_blocks=num_blocks)
    return _scalar_call(kernel, xp, b, bn, num_blocks, n_scratch=3)  # acc, prev, first


class DistortionLoss:
    """JAX/Pallas re-implementation of the PyTorch DistortionLoss forward pass."""

    def __init__(self, mode: str, p: int = 2, **kwargs):
        if mode not in ("l_p", "mfcc_lp", "variance_lp", "boltzmann", "pesq"):
            raise ValueError(f"'{mode}' is't valid mode")
        self.mode = mode
        self.p = int(p)
        self.block_n = int(kwargs.pop("block_n", _DEFAULT_BLOCK_N))
        self.kwargs = kwargs

    def __call__(self, perturbation, **kwargs):
        if perturbation.ndim == 1:
            perturbation = perturbation[None, :]      # mirrors .unsqueeze(0)
        elif perturbation.ndim != 2:
            raise ValueError("perturbation tensor must be 1D or 2D")
        x = perturbation.astype(jnp.float32)
        b, n = x.shape

        if self.mode == "l_p":
            return _run_lp(x, self.p, self.block_n)
        if self.mode == "variance_lp":
            return _run_edge(x, _variance_pair(self.p),
                             _variance_finalize(self.p, n, b), self.block_n)
        if self.mode == "boltzmann":
            return _run_edge(x, _boltzmann_pair,
                             _boltzmann_finalize(n, b), self.block_n)
        # TODO(synk): 'mfcc_lp' needs torchaudio's MFCC transform and 'pesq' needs the
        # external PesqLoss network; no clean in-kernel Pallas equivalent without them.
        raise NotImplementedError(f"mode '{self.mode}' is not supported in the Pallas port")


# ---------------------------------------------------------- pure-JAX refs --

def _ref_lp(x, p):
    norms = jnp.sum(jnp.abs(x) ** p, axis=-1) ** (1.0 / p)
    return jnp.mean(norms) / x.shape[-1]


def _ref_variance_lp(x, p):
    df = jnp.abs(x - jnp.roll(x, -1, axis=-1)) ** p
    db = jnp.abs(x - jnp.roll(x, 1, axis=-1)) ** p
    var = (df + db) / 2
    return jnp.mean(jnp.mean(var, axis=-1) ** (1.0 / p))


def _ref_boltzmann(x):
    xr = jnp.roll(x, 1, axis=1)
    m1 = (jnp.abs(xr) > jnp.abs(x)).astype(jnp.float32)
    m2 = (xr > 0).astype(jnp.float32) * (x < 0).astype(jnp.float32)
    m3 = (xr < 0).astype(jnp.float32) * (x > 0).astype(jnp.float32)
    return jnp.mean((jnp.exp(jnp.abs(xr) - jnp.abs(x)) - 1) * m1
                    + (jnp.exp(xr) - 1) * m2
                    + (jnp.exp(jnp.abs(xr)) - 1) * m3)


# --------------------------------------------------------------------- main --

if __name__ == "__main__":
    key = jax.random.PRNGKey(0)
    B, N = 2, 4000                                   # N not a multiple of the block on purpose
    perturbation = 0.1 * jax.random.normal(key, (B, N), dtype=jnp.float32)

    results = {}
    for mode in ("l_p", "variance_lp", "boltzmann"):
        # block_n=512 so the small demo still exercises multi-tile carries + partial last tile
        loss = DistortionLoss(mode=mode, p=2, block_n=512)(perturbation)
        results[mode] = jax.block_until_ready(loss)

    np.testing.assert_allclose(results["l_p"], _ref_lp(perturbation, 2),
                               rtol=5e-5, atol=1e-6)
    np.testing.assert_allclose(results["variance_lp"], _ref_variance_lp(perturbation, 2),
                               rtol=5e-5, atol=1e-6)
    np.testing.assert_allclose(results["boltzmann"], _ref_boltzmann(perturbation),
                               rtol=5e-5, atol=1e-6)

    # 1-D input path (mirrors perturbation.unsqueeze(0)), default block size
    x1 = 0.1 * jax.random.normal(jax.random.PRNGKey(0), (300,), dtype=jnp.float32)
    l1 = jax.block_until_ready(DistortionLoss(mode="variance_lp", p=2)(x1))
    np.testing.assert_allclose(l1, _ref_variance_lp(x1[None, :], 2),
                               rtol=5e-5, atol=1e-6)

    print("KERNEL_OK")
</pallas_src>

<mosaic_0001>
module attributes {stable_mosaic.version = 11 : i64} {
  func.func @_lp_kernel(%arg0: i32, %arg1: memref<2x512xf32, #tpu.memory_space<vmem>>, %arg2: memref<1x1xf32, #tpu.memory_space<vmem>>, %arg3: memref<2x1xf32, #tpu.memory_space<vmem>>) attributes {dimension_semantics = [#tpu.dimension_semantics<arbitrary>], iteration_bounds = array<i64: 8>, scalar_prefetch = 0 : i64, scratch_operands = 1 : i64, tpu.core_type = #tpu.core_type<tc>, window_params = [{transform_indices = @transform_0, window_bounds = array<i64: 2, 512>}, {pipeline_mode = #tpu.pipeline_mode<synchronous>, transform_indices = @transform_1, window_bounds = array<i64: 1, 1>}]} {
    %c0_i32 = arith.constant 0 : i32
    %0 = arith.cmpi eq, %arg0, %c0_i32 : i32
    %1 = arith.extui %0 : i1 to i32
    %c0_i32_0 = arith.constant 0 : i32
    %2 = arith.cmpi ne, %1, %c0_i32_0 : i32
    scf.if %2 {
      %cst_7 = arith.constant 0.000000e+00 : f32
      %13 = vector.broadcast %cst_7 : f32 to vector<2x1xf32>
      %c0_8 = arith.constant 0 : index
      %c0_9 = arith.constant 0 : index
      %14 = vector.load %arg3[%c0_8, %c0_9] : memref<2x1xf32, #tpu.memory_space<vmem>>, vector<2x1xf32>
      tpu.vector_store %arg3[%c0_8, %c0_9], %13 {strides = array<i32>} : memref<2x1xf32, #tpu.memory_space<vmem>>, vector<2x1xf32>,
    } else {
    }
    %c0 = arith.constant 0 : index
    %c0_1 = arith.constant 0 : index
    %3 = vector.load %arg1[%c0, %c0_1] : memref<2x512xf32, #tpu.memory_space<vmem>>, vector<2x512xf32>
    %c0_2 = arith.constant 0 : index
    %c0_3 = arith.constant 0 : index
    %4 = vector.load %arg3[%c0_2, %c0_3] : memref<2x1xf32, #tpu.memory_space<vmem>>, vector<2x1xf32>
    %5 = arith.mulf %3, %3 : vector<2x512xf32>
    %cst = arith.constant dense<0.000000e+00> : vector<2xf32>
    %6 = vector.multi_reduction <add>, %5, %cst [1] : vector<2x512xf32> to vector<2xf32>
    %7 = vector.shape_cast %6 : vector<2xf32> to vector<2x1xf32>
    %8 = arith.addf %4, %7 : vector<2x1xf32>
    %c0_4 = arith.constant 0 : index
    %c0_5 = arith.constant 0 : index
    %9 = vector.load %arg3[%c0_4, %c0_5] : memref<2x1xf32, #tpu.memory_space<vmem>>, vector<2x1xf32>
    tpu.vector_store %arg3[%c0_4, %c0_5], %8 {strides = array<i32>} : memref<2x1xf32, #tpu.memory_space<vmem>>, vector<2x1xf32>,
    %c7_i32 = arith.constant 7 : i32
    %10 = arith.cmpi eq, %arg0, %c7_i32 : i32
    %11 = arith.extui %10 : i1 to i32
    %c0_i32_6 = arith.constant 0 : i32
    %12 = arith.cmpi ne, %11, %c0_i32_6 : i32
    scf.if %12 {
      %c0_7 = arith.constant 0 : index
      %c0_8 = arith.constant 0 : index
      %13 = vector.load %arg3[%c0_7, %c0_8] : memref<2x1xf32, #tpu.memory_space<vmem>>, vector<2x1xf32>
      %14 = math.sqrt %13 : vector<2x1xf32>
      %cst_9 = arith.constant dense<0.000000e+00> : vector<1xf32>
      %15 = vector.multi_reduction <add>, %14, %cst_9 [0] : vector<2x1xf32> to vector<1xf32>
      %16 = vector.shape_cast %15 : vector<1xf32> to vector<1x1xf32>
      %cst_10 = arith.constant 8.000000e+03 : f32
      %17 = vector.broadcast %cst_10 : f32 to vector<1x1xf32>
      %18 = arith.divf %16, %17 : vector<1x1xf32>
      %c0_11 = arith.constant 0 : index
      %c0_12 = arith.constant 0 : index
      %19 = vector.load %arg2[%c0_11, %c0_12] : memref<1x1xf32, #tpu.memory_space<vmem>>, vector<1x1xf32>
      tpu.vector_store %arg2[%c0_11, %c0_12], %18 {strides = array<i32>} : memref<1x1xf32, #tpu.memory_space<vmem>>, vector<1x1xf32>,
    } else {
    }
    return
  }
  func.func @transform_0(%arg0: i32) -> (i32, i32) {
    %c0_i32 = arith.constant 0 : i32
    %c0_i32_0 = arith.constant 0 : i32
    return %c0_i32, %arg0 : i32, i32
  }
  func.func @transform_1(%arg0: i32) -> (i32, i32) {
    %c0_i32 = arith.constant 0 : i32
    %c0_i32_0 = arith.constant 0 : i32
    %c0_i32_1 = arith.constant 0 : i32
    return %c0_i32, %c0_i32_0 : i32, i32
  }
}

</mosaic_0001>

<llo_original>
// kernel: tpu_custom_call.1
$region0: #{tpu_custom_call.1}
  #allocation0 [shape = 'u32[]', space=smem, size = 0x4, offset = 0x4, fixed_abs, tag = 'smem constant byte address 0x4 - core index']
  #allocation1 [shape = 'u32[144,128]{1,0:T(1,128)}', space=vmem, size = 0x12000, scoped, tag = 'internal scratch']
  #allocation2 [shape = 'f32[2,1]{1,0:T(2,128)}', space=vmem, size = 0x400, scoped, tag = 'scratch operand']
  %s0 = inlined_call_operand.hbm [shape: f32[2,4096], index: 0, kind: input, shape index: {}]
  %s1 = inlined_call_operand.hbm [shape: f32[1,1], index: 1, kind: output, shape index: {}]
  %s2 = sld [smem:[#allocation0]]
  $region49: #{tpu_custom_call.1} parent=0
    _
  %s4 = ssub.s32 1, %s2
  %s5 = scalar_select 0, %s4, %s2
  $region1: #{tpu_custom_call.1} parent=0
    #allocation3 [shape = 'u8[8192]{0}', space=vmem, size = 0x2000, scoped, tag = 'input window, operand 0']
    #allocation4 [shape = 's32[2]{0}', space=sflag, size = 0x8, scoped, tag = 'scoped memory for tpu_custom_call.1']
    #allocation5 [shape = 's32[2]{0}', space=sflag, size = 0x8, scoped, tag = 'scoped memory for tpu_custom_call.1']
    #allocation6 [shape = 'u8[512]{0}', space=vmem, size = 0x400, scoped, tag = 'output window, operand 0, single buffered']
    %6 = vsyncpa [#allocation4], 0
    %s7 = scalar_lea.sflag [#allocation4], 1
    %8 = vsyncpa %s7, 0
    %9 = vsyncpa [#allocation5], 0
    loop: start=0, step=1, limit=10
    $region2: #{tpu_custom_call.1} parent=1 // loop_pre_header
      _
    $region3: #{tpu_custom_call.1} parent=1 // loop_header
      %s11 = sphi 0, %s15
      %p12 = scmp.ge.s32.totalorder %s11, 10
      %s21 = sphi 0, %s23
      %s24 = sphi 0, %s21
      %s25 = sphi 0, %s24
      %s41 = sphi 0, %s25
      %s45 = sphi 0, %s45
      %s47 = sphi 0, %s45
      %s48 = sphi 0, %s47
      %s62 = sphi 0, %s48
    $region4: #{tpu_custom_call.1} parent=1 // loop_header_branch
      %14 = sbr.rel (%p12) target = $region8
    $region5: #{tpu_custom_call.1} parent=1 // loop_body
      %s16 = ssub.s32 %s11, 1
      %s17 = ssub.s32 %s11, 2
      %s18 = sadd.s32 %s11, 1
      %s19 = ssub.s32 %s11, %s18
      %p20 = scmp.eq.s32.totalorder %s19, 0
      %s22 = sadd.s32 %s21, 1
      %s23 = scalar_select %p20, %s21, %s22
      %p26 = pneg %p20
      %p27 = scmp.eq.s32.totalorder %s11, 7
      %p28 = por %p26, %p27
      %p29 = scmp.ne.s32.totalorder %s21, %s24
      %p30 = scmp.eq.s32.totalorder %s11, 0
      %p31 = por %p29, %p30
      %p32 = scmp.ne.s32.totalorder %s21, %s24
      %p33 = scmp.eq.s32.totalorder %s16, 7
      %p34 = por %p32, %p33
      %p35 = scmp.ne.s32.totalorder %s24, %s25
      %p36 = scmp.eq.s32.totalorder %s16, 0
      %p37 = por %p35, %p36
      %p38 = scmp.ne.s32.totalorder %s24, %s25
      %p39 = scmp.eq.s32.totalorder %s17, 7
      %p40 = por %p38, %p39
      %p42 = scmp.ne.s32.totalorder %s25, %s41
      %p43 = scmp.eq.s32.totalorder %s17, 0
      %p44 = por %p42, %p43
      %s46 = sadd.s32 %s45, 1
      %p49 = scmp.eq.s32.totalorder %s11, 7
      %p50 = scmp.ne.s32.totalorder %s45, %s47
      %p51 = scmp.eq.s32.totalorder %s11, 0
      %p52 = por %p50, %p51
      %p53 = scmp.ne.s32.totalorder %s45, %s47
      %p54 = scmp.eq.s32.totalorder %s16, 7
      %p55 = por %p53, %p54
      %p56 = scmp.ne.s32.totalorder %s47, %s48
      %p57 = scmp.eq.s32.totalorder %s16, 0
      %p58 = por %p56, %p57
      %p59 = scmp.ne.s32.totalorder %s47, %s48
      %p60 = scmp.eq.s32.totalorder %s17, 7
      %p61 = por %p59, %p60
      %p63 = scmp.ne.s32.totalorder %s48, %s62
      %p64 = scmp.eq.s32.totalorder %s17, 0
      %p65 = por %p63, %p64
      %p66 = scmp.le.s32.totalorder 1, %s11
      %p67 = scmp.lt.s32.totalorder %s11, 9
      %p68 = pnand %p66, %p67
      %p69 = pneg %p68
      // Predicated region
      $region9: #{tpu_custom_call.1} parent=5 // pred_check
        _
      $region10: #{tpu_custom_call.1} parent=5 // pred_check_branch
        %71 = sbr.rel (%p68) target = $region12
      $region11: #{tpu_custom_call.1} parent=5 // pred_region
        %s72 = ssub.s32 %s11, 1
      $region12: #{tpu_custom_call.1} parent=5 // pred_fallthru
        _
      %p73 = scmp.lt.s32.totalorder %s11, 8
      // Predicated region
      $region13: #{tpu_custom_call.1} parent=5 // pred_check
        %p74 = pneg %p73
      $region14: #{tpu_custom_call.1} parent=5 // pred_check_branch
        %76 = sbr.rel (%p74) target = $region16
      $region15: #{tpu_custom_call.1} parent=5 // pred_region
        // Predicated region
        $region17: #{tpu_custom_call.1} parent=15 // pred_check
          %p77 = pneg %p31
        $region18: #{tpu_custom_call.1} parent=15 // pred_check_branch
          %79 = sbr.rel (%p77) target = $region20
        $region19: #{tpu_custom_call.1} parent=15 // pred_region
          %s80 = sand.u32 %s21, 1
          %s81 = scalar_lea.sflag [#allocation4], %s80
          %s82 = sand.u32 %s21, 1
          %s83 = smul.addr %s82, 8
          %s84 = scalar_lea.vmem [#allocation3], %s83
          %s85 = smul.u32 4, %s11
          %s87 = ssub.s32 128, 128
          %88 = vsyncadd %s81, %s87
          %s89 = smul.addr %s85, 32
          %s90 = scalar_lea.hbm %s0, %s89
          %s92 = sshll.u32 %s84, 4
          %s93 = int_to_ptr.vmem [resolvable:$true] %s92
          %95 = dma.hbm_to_vmem [thread:$0]  %s90, 128, %s93, %s81
        $region20: #{tpu_custom_call.1} parent=15 // pred_fallthru
          _
      $region16: #{tpu_custom_call.1} parent=5 // pred_fallthru
        _
      %p96 = scmp.le.s32.totalorder 1, %s11
      %p97 = scmp.lt.s32.totalorder %s11, 9
      %p98 = pnand %p96, %p97
      %p99 = pneg %p98
      // Predicated region
      $region21: #{tpu_custom_call.1} parent=5 // pred_check
        _
      $region22: #{tpu_custom_call.1} parent=5 // pred_check_branch
        %101 = sbr.rel (%p98) target = $region24
      $region23: #{tpu_custom_call.1} parent=5 // pred_region
        %s102 = ssub.s32 %s11, 1
        %s103 = sand.u32 %s24, 1
        %s104 = scalar_lea.sflag [#allocation4], %s103
        %s105 = sand.u32 %s24, 1
        %s106 = smul.addr %s105, 8
        %s107 = scalar_lea.vmem [#allocation3], %s106
        // Predicated region
        $region25: #{tpu_custom_call.1} parent=23 // pred_check
          %p108 = pneg %p37
        $region26: #{tpu_custom_call.1} parent=23 // pred_check_branch
          %110 = sbr.rel (%p108) target = $region28
        $region27: #{tpu_custom_call.1} parent=23 // pred_region
          %111 = dma.done %s104, 128
        $region28: #{tpu_custom_call.1} parent=23 // pred_fallthru
          _
        %s112 = sand.u32 %s24, 1
        %s113 = scalar_lea.sflag [#allocation4], %s112
        %s114 = sand.u32 %s24, 1
        %s115 = smul.addr %s114, 8
        %s116 = scalar_lea.vmem [#allocation3], %s115
        %p117 = pneg %p37
        %p118 = pneg %p34
        %p119 = pneg %p58
        %p120 = pneg %p55
        %s121 = smul.u32 4, %s16
        %p122 = scmp.eq.s32.totalorder %s16, 0
        // Predicated region
        $region29: #{tpu_custom_call.1} parent=23 // pred_check
          %p123 = pneg %p122
        $region30: #{tpu_custom_call.1} parent=23 // pred_check_branch
          %125 = sbr.rel (%p123) target = $region32
        $region31: #{tpu_custom_call.1} parent=23 // pred_region
          %vm126 = vcmask 1024
          %127 = vst.msk [vmem:[#allocation2] sm:$0x3] %vm126, 0.0
        $region32: #{tpu_custom_call.1} parent=23 // pred_fallthru
          _
        %v128 = vld [vmem:[%s107] sm:$0xff]
        %v129 = vld [vmem:[#allocation2] sm:$0x3]
        %v130 = vmul.f32 %v128, %v128
        %v132 = vcombine.high %v130, %v130
        %v134 = vunpack.c.l.s4 1983009808
        %v135 = vunpack.c.0.s8 %v134
        %v136 = vlaneseq
        %v137 = vshrl.u32 %v136, 7
        %v138 = vsub.s32 %v135, %v137
        %v139 = vrot.slane %v130, %v138
        %v141 = vunpack.c.l.s4 1983009808
        %v142 = vunpack.c.0.s8 %v141
        %v143 = vlaneseq
        %v144 = vshrl.u32 %v143, 7
        %v145 = vsub.s32 %v142, %v144
        %v146 = vrot.slane %v132, %v145
        %v147 = vcombine.high %v139, %v139
        %v148 = vcombine.high %v146, %v146
        %vm153 = vcmask 1041408
        %v154 = vsel %vm153, %v139, 0.0
        %v155 = vsel %vm153, %v147, 0.0
        %v156 = vadd.f32 %v154, %v155
        %v157 = vsel %vm153, %v146, 0.0
        %v158 = vadd.f32 %v156, %v157
        %v159 = vsel %vm153, %v148, 0.0
        %v160 = vadd.f32 %v158, %v159
        %161 = vadd.xlane.f32.xlu0 %v160
        %v162 = vpop.xlane.xlu0 %161
        %v163 = vadd.f32 %v129, %v162
        %vm164 = vcmask 1024
        %165 = vst.msk [vmem:[#allocation2] sm:$0x3] %vm164, %v163
        %p166 = scmp.eq.s32.totalorder %s16, 7
        // Predicated region
        $region33: #{tpu_custom_call.1} parent=23 // pred_check
          %p167 = pneg %p166
        $region34: #{tpu_custom_call.1} parent=23 // pred_check_branch
          %169 = sbr.rel (%p167) target = $region36
        $region35: #{tpu_custom_call.1} parent=23 // pred_region
          %v170 = vld [vmem:[#allocation2] sm:$0x3]
          %v171 = vrsqrt.pop %v170
          %v172 = vmul.f32 %v170, %v171
          %vm173 = vcmp.eq.f32.partialorder %v170, inf
          %v174 = vsel %vm173, %v170, %v172
          %vm175 = vcmp.eq.f32.partialorder %v170, 0.0
          %v176 = vand.u32 %v170, 2147483648
          %v177 = vsel %vm175, %v176, %v174
          %v178 = vsel %vm164, %v177, 0.0
          %v179 = vrot.slane %v178, 4
          %v180 = vadd.f32 %v178, %v179
          %v181 = vrot.slane %v180, 2
          %v182 = vadd.f32 %v180, %v181
          %v183 = vrot.slane %v182, 1
          %v184 = vadd.f32 %v182, %v183
          %v185 = vrcp.pop 8000.0
          %v186 = vmul.f32 %v184, %v185
          %vm187 = vcmask 0
          %188 = vst.msk [vmem:[#allocation6] sm:$0x1] %vm187, %v186
        $region36: #{tpu_custom_call.1} parent=23 // pred_fallthru
          _
        // Predicated region
        $region37: #{tpu_custom_call.1} parent=23 // pred_check
          %p189 = pneg %p55
        $region38: #{tpu_custom_call.1} parent=23 // pred_check_branch
          %191 = sbr.rel (%p189) target = $region40
        $region39: #{tpu_custom_call.1} parent=23 // pred_region
          %s193 = ssub.s32 16, 16
          %194 = vsyncadd [#allocation5], %s193
          %s196 = sshll.u32 [#allocation6], 4
          %s197 = int_to_ptr.vmem [resolvable:$true] %s196
          %199 = dma.vmem_to_hbm [thread:$0]  %s197, 16, %s1, [#allocation5]
        $region40: #{tpu_custom_call.1} parent=23 // pred_fallthru
          _
        // Predicated region
        $region41: #{tpu_custom_call.1} parent=23 // pred_check
          %p200 = pneg %p55
        $region42: #{tpu_custom_call.1} parent=23 // pred_check_branch
          %202 = sbr.rel (%p200) target = $region44
        $region43: #{tpu_custom_call.1} parent=23 // pred_region
          %203 = dma.done [#allocation5], 16
        $region44: #{tpu_custom_call.1} parent=23 // pred_fallthru
          _
      $region24: #{tpu_custom_call.1} parent=5 // pred_fallthru
        _
      %p204 = scmp.le.s32.totalorder 2, %s11
      // Predicated region
      $region45: #{tpu_custom_call.1} parent=5 // pred_check
        %p205 = pneg %p204
      $region46: #{tpu_custom_call.1} parent=5 // pred_check_branch
        %207 = sbr.rel (%p205) target = $region48
      $region47: #{tpu_custom_call.1} parent=5 // pred_region
        %s208 = ssub.s32 %s11, 2
      $region48: #{tpu_custom_call.1} parent=5 // pred_fallthru
        _
    $region6: #{tpu_custom_call.1} parent=1 // loop_footer
      %s15 = sadd.s32 1, %s11
    $region7: #{tpu_custom_call.1} parent=1 // loop_footer_branch
      %10 = sbr.rel target = $region3
    $region8: #{tpu_custom_call.1} parent=1 // loop_exit
      _
    %209 = vsyncpa [#allocation4], 1
    %s210 = scalar_lea.sflag [#allocation4], 1
    %211 = vsyncpa %s210, 1
    %212 = vsyncpa [#allocation5], 1
    %s213 = scalar_lea.sflag [#allocation5], 1
    %214 = vsyncpa %s213, 1

</llo_original>
